<compile_context>
chip_gen: v5e
topology: v5e:2x2
jax: 0.10.0
libtpu: 0.0.40
codegen_flags: <defaults>
</compile_context>

<pallas_src>
import functools

import jax
import jax.numpy as jnp
from jax.experimental import pallas as pl
from jax.experimental.pallas import tpu as pltpu


def lstm_recurrence_kernel(xp_ref, wc_ref, h_ref, cfin_ref, *, small_c_fma):
    """Sequential part only.

    xp_ref   : (S, B, 4C)  precomputed x-projection (+ bias) for all gates/steps
    wc_ref   : (C, 4C)     fused recurrent (cell-state) gate weights
    h_ref    : (S, B, C)   hidden-state sequence output
    cfin_ref : (1, B, C)   final cell state output
    """
    S, B, _ = xp_ref.shape
    C = wc_ref.shape[0]

    wc = wc_ref[...]                      # load fused recurrent weight once
    c = jnp.zeros((B, C), jnp.float32)    # cell state carried in registers

    # Fully unrolled time loop (S is a small static constant). The only
    # sequentially-dependent work per step is the tiny fused-gate contraction.
    for t in range(S):
        if small_c_fma:
            # VPU broadcast-FMA path: unroll the (tiny) C contraction so the
            # serial critical path never round-trips through the MXU.
            g = xp_ref[t]                                          # (B, 4C)
            for k in range(C):
                g = g + c[:, k:k + 1] * wc[k:k + 1, :]             # (B,1)*(1,4C)
        else:
            g = xp_ref[t] + jnp.dot(c, wc,
                                    preferred_element_type=jnp.float32)
        f_g = jax.nn.sigmoid(g[:, 0 * C:1 * C])   # forget gate
        i_1 = jax.nn.sigmoid(g[:, 1 * C:2 * C])   # input gate 1
        i_2 = jnp.tanh(g[:, 2 * C:3 * C])         # input gate 2
        o_1 = jax.nn.sigmoid(g[:, 3 * C:4 * C])   # output gate
        c = c * f_g + i_1 * i_2
        h_ref[t] = o_1 * jnp.tanh(c)              # static-index VMEM store

    cfin_ref[0] = c                               # final cell state, once


def my_lstm_forward(x, params):
    """x: (B, S, F) float32. Returns (out_seq (B, S, O), cell_state (1, B, C))."""
    B, S, F = x.shape
    wf, wi1, wi2, wo = (params["w_forget"], params["w_input1"],
                        params["w_input2"], params["w_output"])
    C = wf.shape[0]
    O = params["w_cls"].shape[0]
    G = 4 * C

    # Fuse the 4 PyTorch-layout Linear layers (weights are (C, F+C), applied
    # to the concat [c, x_t]) into split recurrent / input weights.
    wc_all = jnp.concatenate([w[:, :C].T for w in (wf, wi1, wi2, wo)], axis=1)  # (C, 4C)
    wx_all = jnp.concatenate([w[:, C:].T for w in (wf, wi1, wi2, wo)], axis=1)  # (F, 4C)
    bg_all = jnp.concatenate([params["b_forget"], params["b_input1"],
                              params["b_input2"], params["b_output"]],
                             axis=0)[None, :]                                   # (1, 4C)

    xt = jnp.transpose(x, (1, 0, 2)).astype(jnp.float32)            # (S, B, F)

    # Hoisted, time-parallel x projection for all 4 gates: one big matmul.
    xp = (xt.reshape(S * B, F) @ wx_all + bg_all).reshape(S, B, G)  # (S, B, 4C)

    kernel = functools.partial(lstm_recurrence_kernel, small_c_fma=(C <= 8))

    h_seq, c_final = pl.pallas_call(
        kernel,
        out_shape=(
            jax.ShapeDtypeStruct((S, B, C), jnp.float32),
            jax.ShapeDtypeStruct((1, B, C), jnp.float32),
        ),
        grid_spec=pltpu.PrefetchScalarGridSpec(
            num_scalar_prefetch=0,
            grid=(1,),                                              # single invocation
            in_specs=[
                pl.BlockSpec((S, B, G), lambda i: (0, 0, 0)),       # xp, fully resident
                pl.BlockSpec((C, G), lambda i: (0, 0)),             # fused recurrent W
            ],
            out_specs=(
                pl.BlockSpec((S, B, C), lambda i: (0, 0, 0)),       # h sequence
                pl.BlockSpec((1, B, C), lambda i: (0, 0, 0)),       # final cell state
            ),
        ),
        compiler_params=pltpu.CompilerParams(
            dimension_semantics=("arbitrary",)),
        # NOTE: at these sizes everything is a few KiB; if scaled up (v7x: only
        # 64 MiB VMEM), set vmem_limit_bytes and chunk the sequence / add a
        # 'parallel' batch grid axis instead of growing this single block.
    )(xp, wc_all)

    # Hoisted classifier: one matmul over all timesteps after the recurrence.
    y = (h_seq.reshape(S * B, C) @ params["w_cls"].T
         + params["b_cls"][None, :]).reshape(S, B, O)

    return jnp.transpose(y, (1, 0, 2)), c_final


def ref_lstm(x, params):
    """Pure-JAX reference mirroring the PyTorch forward literally."""
    B, S, _ = x.shape
    C = params["w_forget"].shape[0]
    c = jnp.zeros((B, C), jnp.float32)
    outs = []
    for t in range(S):
        inp = jnp.concatenate([c, x[:, t, :]], axis=1)   # cat(cell_state, x_t)
        f_g = jax.nn.sigmoid(inp @ params["w_forget"].T + params["b_forget"])
        c = c * f_g
        i_1 = jax.nn.sigmoid(inp @ params["w_input1"].T + params["b_input1"])
        i_2 = jnp.tanh(inp @ params["w_input2"].T + params["b_input2"])
        c = c + i_1 * i_2
        o_1 = jax.nn.sigmoid(inp @ params["w_output"].T + params["b_output"])
        h = o_1 * jnp.tanh(c)
        outs.append(h @ params["w_cls"].T + params["b_cls"])
    return jnp.stack(outs, axis=1), c[None]


def init_params(key, in_features=6, cell_state_size=2, out_features=2):
    """Parameters in the original PyTorch layout: gate Linear(F+C -> C), cls Linear(C -> O)."""
    C, F, O = cell_state_size, in_features, out_features
    ks = jax.random.split(key, 10)
    s = 0.3
    return {
        "w_forget": s * jax.random.normal(ks[0], (C, F + C), jnp.float32),
        "b_forget": s * jax.random.normal(ks[1], (C,), jnp.float32),
        "w_input1": s * jax.random.normal(ks[2], (C, F + C), jnp.float32),
        "b_input1": s * jax.random.normal(ks[3], (C,), jnp.float32),
        "w_input2": s * jax.random.normal(ks[4], (C, F + C), jnp.float32),
        "b_input2": s * jax.random.normal(ks[5], (C,), jnp.float32),
        "w_output": s * jax.random.normal(ks[6], (C, F + C), jnp.float32),
        "b_output": s * jax.random.normal(ks[7], (C,), jnp.float32),
        "w_cls":    s * jax.random.normal(ks[8], (O, C), jnp.float32),
        "b_cls":    s * jax.random.normal(ks[9], (O,), jnp.float32),
    }


if __name__ == "__main__":
    key = jax.random.PRNGKey(0)
    kx, kp = jax.random.split(key)

    B, S, F = 4, 8, 6          # batch, sequence length, in_features
    params = init_params(kp, in_features=F, cell_state_size=2, out_features=2)
    x = jax.random.normal(kx, (B, S, F), jnp.float32)

    fwd = jax.jit(my_lstm_forward)           # fuse wrapper matmuls + pallas_call
    out_seq, cell_state = fwd(x, params)
    jax.block_until_ready((out_seq, cell_state))

    ref_seq, ref_cell = ref_lstm(x, params)
    assert out_seq.shape == (B, S, 2) and cell_state.shape == (1, B, 2)
    assert jnp.allclose(out_seq, ref_seq, atol=1e-5, rtol=1e-5)
    assert jnp.allclose(cell_state, ref_cell, atol=1e-5, rtol=1e-5)

    # TODO(synk): the per-step print() debug statements in the PyTorch forward
    # are intentionally omitted (no numerical effect).
    print("KERNEL_OK")
</pallas_src>

<mosaic_0001>
module attributes {stable_mosaic.version = 11 : i64} {
  func.func @lstm_recurrence_kernel(%arg0: i32, %arg1: memref<8x4x8xf32, #tpu.memory_space<vmem>>, %arg2: memref<2x8xf32, #tpu.memory_space<vmem>>, %arg3: memref<8x4x2xf32, #tpu.memory_space<vmem>>, %arg4: memref<1x4x2xf32, #tpu.memory_space<vmem>>) attributes {dimension_semantics = [#tpu.dimension_semantics<arbitrary>], iteration_bounds = array<i64: 1>, scalar_prefetch = 0 : i64, scratch_operands = 0 : i64, tpu.core_type = #tpu.core_type<tc>, window_params = [{pipeline_mode = #tpu.pipeline_mode<synchronous>, transform_indices = @transform_0, window_bounds = array<i64: 8, 4, 8>}, {pipeline_mode = #tpu.pipeline_mode<synchronous>, transform_indices = @transform_1, window_bounds = array<i64: 2, 8>}, {pipeline_mode = #tpu.pipeline_mode<synchronous>, transform_indices = @transform_2, window_bounds = array<i64: 8, 4, 2>}, {pipeline_mode = #tpu.pipeline_mode<synchronous>, transform_indices = @transform_3, window_bounds = array<i64: 1, 4, 2>}]} {
    %c0 = arith.constant 0 : index
    %c0_0 = arith.constant 0 : index
    %0 = vector.load %arg2[%c0, %c0_0] : memref<2x8xf32, #tpu.memory_space<vmem>>, vector<2x8xf32>
    %cst = arith.constant 0.000000e+00 : f32
    %1 = vector.broadcast %cst : f32 to vector<4x2xf32>
    %c0_1 = arith.constant 0 : index
    %c0_2 = arith.constant 0 : index
    %c0_3 = arith.constant 0 : index
    %2 = vector.load %arg1[%c0_1, %c0_2, %c0_3] : memref<8x4x8xf32, #tpu.memory_space<vmem>>, vector<1x4x8xf32>
    %3 = vector.shape_cast %2 : vector<1x4x8xf32> to vector<4x8xf32>
    %4 = vector.extract_strided_slice %1 {offsets = [0, 0], sizes = [4, 1], strides = [1, 1]} : vector<4x2xf32> to vector<4x1xf32>
    %5 = vector.extract_strided_slice %0 {offsets = [0, 0], sizes = [1, 8], strides = [1, 1]} : vector<2x8xf32> to vector<1x8xf32>
    %6 = vector.broadcast %4 : vector<4x1xf32> to vector<4x8xf32>
    %7 = vector.broadcast %5 : vector<1x8xf32> to vector<4x8xf32>
    %8 = arith.mulf %6, %7 : vector<4x8xf32>
    %9 = arith.addf %3, %8 : vector<4x8xf32>
    %10 = vector.extract_strided_slice %1 {offsets = [0, 1], sizes = [4, 1], strides = [1, 1]} : vector<4x2xf32> to vector<4x1xf32>
    %11 = vector.extract_strided_slice %0 {offsets = [1, 0], sizes = [1, 8], strides = [1, 1]} : vector<2x8xf32> to vector<1x8xf32>
    %12 = vector.broadcast %10 : vector<4x1xf32> to vector<4x8xf32>
    %13 = vector.broadcast %11 : vector<1x8xf32> to vector<4x8xf32>
    %14 = arith.mulf %12, %13 : vector<4x8xf32>
    %15 = arith.addf %9, %14 : vector<4x8xf32>
    %16 = vector.extract_strided_slice %15 {offsets = [0, 0], sizes = [4, 2], strides = [1, 1]} : vector<4x8xf32> to vector<4x2xf32>
    %17 = arith.negf %16 : vector<4x2xf32>
    %18 = math.exp %17 : vector<4x2xf32>
    %cst_4 = arith.constant 1.000000e+00 : f32
    %19 = vector.broadcast %cst_4 : f32 to vector<4x2xf32>
    %20 = arith.addf %19, %18 : vector<4x2xf32>
    %21 = arith.divf %19, %20 : vector<4x2xf32>
    %22 = vector.extract_strided_slice %15 {offsets = [0, 2], sizes = [4, 2], strides = [1, 1]} : vector<4x8xf32> to vector<4x2xf32>
    %23 = arith.negf %22 : vector<4x2xf32>
    %24 = math.exp %23 : vector<4x2xf32>
    %cst_5 = arith.constant 1.000000e+00 : f32
    %25 = vector.broadcast %cst_5 : f32 to vector<4x2xf32>
    %26 = arith.addf %25, %24 : vector<4x2xf32>
    %27 = arith.divf %25, %26 : vector<4x2xf32>
    %28 = vector.extract_strided_slice %15 {offsets = [0, 4], sizes = [4, 2], strides = [1, 1]} : vector<4x8xf32> to vector<4x2xf32>
    %29 = math.tanh %28 : vector<4x2xf32>
    %30 = vector.extract_strided_slice %15 {offsets = [0, 6], sizes = [4, 2], strides = [1, 1]} : vector<4x8xf32> to vector<4x2xf32>
    %31 = arith.negf %30 : vector<4x2xf32>
    %32 = math.exp %31 : vector<4x2xf32>
    %cst_6 = arith.constant 1.000000e+00 : f32
    %33 = vector.broadcast %cst_6 : f32 to vector<4x2xf32>
    %34 = arith.addf %33, %32 : vector<4x2xf32>
    %35 = arith.divf %33, %34 : vector<4x2xf32>
    %36 = arith.mulf %1, %21 : vector<4x2xf32>
    %37 = arith.mulf %27, %29 : vector<4x2xf32>
    %38 = arith.addf %36, %37 : vector<4x2xf32>
    %39 = math.tanh %38 : vector<4x2xf32>
    %40 = arith.mulf %35, %39 : vector<4x2xf32>
    %c0_7 = arith.constant 0 : index
    %c0_8 = arith.constant 0 : index
    %c0_9 = arith.constant 0 : index
    %41 = vector.load %arg3[%c0_7, %c0_8, %c0_9] : memref<8x4x2xf32, #tpu.memory_space<vmem>>, vector<1x4x2xf32>
    %42 = vector.shape_cast %41 : vector<1x4x2xf32> to vector<4x2xf32>
    %43 = vector.shape_cast %40 : vector<4x2xf32> to vector<1x4x2xf32>
    tpu.vector_store %arg3[%c0_7, %c0_8, %c0_9], %43 {strides = array<i32>} : memref<8x4x2xf32, #tpu.memory_space<vmem>>, vector<1x4x2xf32>,
    %c1 = arith.constant 1 : index
    %c0_10 = arith.constant 0 : index
    %c0_11 = arith.constant 0 : index
    %44 = vector.load %arg1[%c1, %c0_10, %c0_11] : memref<8x4x8xf32, #tpu.memory_space<vmem>>, vector<1x4x8xf32>
    %45 = vector.shape_cast %44 : vector<1x4x8xf32> to vector<4x8xf32>
    %46 = vector.extract_strided_slice %38 {offsets = [0, 0], sizes = [4, 1], strides = [1, 1]} : vector<4x2xf32> to vector<4x1xf32>
    %47 = vector.extract_strided_slice %0 {offsets = [0, 0], sizes = [1, 8], strides = [1, 1]} : vector<2x8xf32> to vector<1x8xf32>
    %48 = vector.broadcast %46 : vector<4x1xf32> to vector<4x8xf32>
    %49 = vector.broadcast %47 : vector<1x8xf32> to vector<4x8xf32>
    %50 = arith.mulf %48, %49 : vector<4x8xf32>
    %51 = arith.addf %45, %50 : vector<4x8xf32>
    %52 = vector.extract_strided_slice %38 {offsets = [0, 1], sizes = [4, 1], strides = [1, 1]} : vector<4x2xf32> to vector<4x1xf32>
    %53 = vector.extract_strided_slice %0 {offsets = [1, 0], sizes = [1, 8], strides = [1, 1]} : vector<2x8xf32> to vector<1x8xf32>
    %54 = vector.broadcast %52 : vector<4x1xf32> to vector<4x8xf32>
    %55 = vector.broadcast %53 : vector<1x8xf32> to vector<4x8xf32>
    %56 = arith.mulf %54, %55 : vector<4x8xf32>
    %57 = arith.addf %51, %56 : vector<4x8xf32>
    %58 = vector.extract_strided_slice %57 {offsets = [0, 0], sizes = [4, 2], strides = [1, 1]} : vector<4x8xf32> to vector<4x2xf32>
    %59 = arith.negf %58 : vector<4x2xf32>
    %60 = math.exp %59 : vector<4x2xf32>
    %cst_12 = arith.constant 1.000000e+00 : f32
    %61 = vector.broadcast %cst_12 : f32 to vector<4x2xf32>
    %62 = arith.addf %61, %60 : vector<4x2xf32>
    %63 = arith.divf %61, %62 : vector<4x2xf32>
    %64 = vector.extract_strided_slice %57 {offsets = [0, 2], sizes = [4, 2], strides = [1, 1]} : vector<4x8xf32> to vector<4x2xf32>
    %65 = arith.negf %64 : vector<4x2xf32>
    %66 = math.exp %65 : vector<4x2xf32>
    %cst_13 = arith.constant 1.000000e+00 : f32
    %67 = vector.broadcast %cst_13 : f32 to vector<4x2xf32>
    %68 = arith.addf %67, %66 : vector<4x2xf32>
    %69 = arith.divf %67, %68 : vector<4x2xf32>
    %70 = vector.extract_strided_slice %57 {offsets = [0, 4], sizes = [4, 2], strides = [1, 1]} : vector<4x8xf32> to vector<4x2xf32>
    %71 = math.tanh %70 : vector<4x2xf32>
    %72 = vector.extract_strided_slice %57 {offsets = [0, 6], sizes = [4, 2], strides = [1, 1]} : vector<4x8xf32> to vector<4x2xf32>
    %73 = arith.negf %72 : vector<4x2xf32>
    %74 = math.exp %73 : vector<4x2xf32>
    %cst_14 = arith.constant 1.000000e+00 : f32
    %75 = vector.broadcast %cst_14 : f32 to vector<4x2xf32>
    %76 = arith.addf %75, %74 : vector<4x2xf32>
    %77 = arith.divf %75, %76 : vector<4x2xf32>
    %78 = arith.mulf %38, %63 : vector<4x2xf32>
    %79 = arith.mulf %69, %71 : vector<4x2xf32>
    %80 = arith.addf %78, %79 : vector<4x2xf32>
    %81 = math.tanh %80 : vector<4x2xf32>
    %82 = arith.mulf %77, %81 : vector<4x2xf32>
    %c1_15 = arith.constant 1 : index
    %c0_16 = arith.constant 0 : index
    %c0_17 = arith.constant 0 : index
    %83 = vector.load %arg3[%c1_15, %c0_16, %c0_17] : memref<8x4x2xf32, #tpu.memory_space<vmem>>, vector<1x4x2xf32>
    %84 = vector.shape_cast %83 : vector<1x4x2xf32> to vector<4x2xf32>
    %85 = vector.shape_cast %82 : vector<4x2xf32> to vector<1x4x2xf32>
    tpu.vector_store %arg3[%c1_15, %c0_16, %c0_17], %85 {strides = array<i32>} : memref<8x4x2xf32, #tpu.memory_space<vmem>>, vector<1x4x2xf32>,
    %c2 = arith.constant 2 : index
    %c0_18 = arith.constant 0 : index
    %c0_19 = arith.constant 0 : index
    %86 = vector.load %arg1[%c2, %c0_18, %c0_19] : memref<8x4x8xf32, #tpu.memory_space<vmem>>, vector<1x4x8xf32>
    %87 = vector.shape_cast %86 : vector<1x4x8xf32> to vector<4x8xf32>
    %88 = vector.extract_strided_slice %80 {offsets = [0, 0], sizes = [4, 1], strides = [1, 1]} : vector<4x2xf32> to vector<4x1xf32>
    %89 = vector.extract_strided_slice %0 {offsets = [0, 0], sizes = [1, 8], strides = [1, 1]} : vector<2x8xf32> to vector<1x8xf32>
    %90 = vector.broadcast %88 : vector<4x1xf32> to vector<4x8xf32>
    %91 = vector.broadcast %89 : vector<1x8xf32> to vector<4x8xf32>
    %92 = arith.mulf %90, %91 : vector<4x8xf32>
    %93 = arith.addf %87, %92 : vector<4x8xf32>
    %94 = vector.extract_strided_slice %80 {offsets = [0, 1], sizes = [4, 1], strides = [1, 1]} : vector<4x2xf32> to vector<4x1xf32>
    %95 = vector.extract_strided_slice %0 {offsets = [1, 0], sizes = [1, 8], strides = [1, 1]} : vector<2x8xf32> to vector<1x8xf32>
    %96 = vector.broadcast %94 : vector<4x1xf32> to vector<4x8xf32>
    %97 = vector.broadcast %95 : vector<1x8xf32> to vector<4x8xf32>
    %98 = arith.mulf %96, %97 : vector<4x8xf32>
    %99 = arith.addf %93, %98 : vector<4x8xf32>
    %100 = vector.extract_strided_slice %99 {offsets = [0, 0], sizes = [4, 2], strides = [1, 1]} : vector<4x8xf32> to vector<4x2xf32>
    %101 = arith.negf %100 : vector<4x2xf32>
    %102 = math.exp %101 : vector<4x2xf32>
    %cst_20 = arith.constant 1.000000e+00 : f32
    %103 = vector.broadcast %cst_20 : f32 to vector<4x2xf32>
    %104 = arith.addf %103, %102 : vector<4x2xf32>
    %105 = arith.divf %103, %104 : vector<4x2xf32>
    %106 = vector.extract_strided_slice %99 {offsets = [0, 2], sizes = [4, 2], strides = [1, 1]} : vector<4x8xf32> to vector<4x2xf32>
    %107 = arith.negf %106 : vector<4x2xf32>
    %108 = math.exp %107 : vector<4x2xf32>
    %cst_21 = arith.constant 1.000000e+00 : f32
    %109 = vector.broadcast %cst_21 : f32 to vector<4x2xf32>
    %110 = arith.addf %109, %108 : vector<4x2xf32>
    %111 = arith.divf %109, %110 : vector<4x2xf32>
    %112 = vector.extract_strided_slice %99 {offsets = [0, 4], sizes = [4, 2], strides = [1, 1]} : vector<4x8xf32> to vector<4x2xf32>
    %113 = math.tanh %112 : vector<4x2xf32>
    %114 = vector.extract_strided_slice %99 {offsets = [0, 6], sizes = [4, 2], strides = [1, 1]} : vector<4x8xf32> to vector<4x2xf32>
    %115 = arith.negf %114 : vector<4x2xf32>
    %116 = math.exp %115 : vector<4x2xf32>
    %cst_22 = arith.constant 1.000000e+00 : f32
    %117 = vector.broadcast %cst_22 : f32 to vector<4x2xf32>
    %118 = arith.addf %117, %116 : vector<4x2xf32>
    %119 = arith.divf %117, %118 : vector<4x2xf32>
    %120 = arith.mulf %80, %105 : vector<4x2xf32>
    %121 = arith.mulf %111, %113 : vector<4x2xf32>
    %122 = arith.addf %120, %121 : vector<4x2xf32>
    %123 = math.tanh %122 : vector<4x2xf32>
    %124 = arith.mulf %119, %123 : vector<4x2xf32>
    %c2_23 = arith.constant 2 : index
    %c0_24 = arith.constant 0 : index
    %c0_25 = arith.constant 0 : index
    %125 = vector.load %arg3[%c2_23, %c0_24, %c0_25] : memref<8x4x2xf32, #tpu.memory_space<vmem>>, vector<1x4x2xf32>
    %126 = vector.shape_cast %125 : vector<1x4x2xf32> to vector<4x2xf32>
    %127 = vector.shape_cast %124 : vector<4x2xf32> to vector<1x4x2xf32>
    tpu.vector_store %arg3[%c2_23, %c0_24, %c0_25], %127 {strides = array<i32>} : memref<8x4x2xf32, #tpu.memory_space<vmem>>, vector<1x4x2xf32>,
    %c3 = arith.constant 3 : index
    %c0_26 = arith.constant 0 : index
    %c0_27 = arith.constant 0 : index
    %128 = vector.load %arg1[%c3, %c0_26, %c0_27] : memref<8x4x8xf32, #tpu.memory_space<vmem>>, vector<1x4x8xf32>
    %129 = vector.shape_cast %128 : vector<1x4x8xf32> to vector<4x8xf32>
    %130 = vector.extract_strided_slice %122 {offsets = [0, 0], sizes = [4, 1], strides = [1, 1]} : vector<4x2xf32> to vector<4x1xf32>
    %131 = vector.extract_strided_slice %0 {offsets = [0, 0], sizes = [1, 8], strides = [1, 1]} : vector<2x8xf32> to vector<1x8xf32>
    %132 = vector.broadcast %130 : vector<4x1xf32> to vector<4x8xf32>
    %133 = vector.broadcast %131 : vector<1x8xf32> to vector<4x8xf32>
    %134 = arith.mulf %132, %133 : vector<4x8xf32>
    %135 = arith.addf %129, %134 : vector<4x8xf32>
    %136 = vector.extract_strided_slice %122 {offsets = [0, 1], sizes = [4, 1], strides = [1, 1]} : vector<4x2xf32> to vector<4x1xf32>
    %137 = vector.extract_strided_slice %0 {offsets = [1, 0], sizes = [1, 8], strides = [1, 1]} : vector<2x8xf32> to vector<1x8xf32>
    %138 = vector.broadcast %136 : vector<4x1xf32> to vector<4x8xf32>
    %139 = vector.broadcast %137 : vector<1x8xf32> to vector<4x8xf32>
    %140 = arith.mulf %138, %139 : vector<4x8xf32>
    %141 = arith.addf %135, %140 : vector<4x8xf32>
    %142 = vector.extract_strided_slice %141 {offsets = [0, 0], sizes = [4, 2], strides = [1, 1]} : vector<4x8xf32> to vector<4x2xf32>
    %143 = arith.negf %142 : vector<4x2xf32>
    %144 = math.exp %143 : vector<4x2xf32>
    %cst_28 = arith.constant 1.000000e+00 : f32
    %145 = vector.broadcast %cst_28 : f32 to vector<4x2xf32>
    %146 = arith.addf %145, %144 : vector<4x2xf32>
    %147 = arith.divf %145, %146 : vector<4x2xf32>
    %148 = vector.extract_strided_slice %141 {offsets = [0, 2], sizes = [4, 2], strides = [1, 1]} : vector<4x8xf32> to vector<4x2xf32>
    %149 = arith.negf %148 : vector<4x2xf32>
    %150 = math.exp %149 : vector<4x2xf32>
    %cst_29 = arith.constant 1.000000e+00 : f32
    %151 = vector.broadcast %cst_29 : f32 to vector<4x2xf32>
    %152 = arith.addf %151, %150 : vector<4x2xf32>
    %153 = arith.divf %151, %152 : vector<4x2xf32>
    %154 = vector.extract_strided_slice %141 {offsets = [0, 4], sizes = [4, 2], strides = [1, 1]} : vector<4x8xf32> to vector<4x2xf32>
    %155 = math.tanh %154 : vector<4x2xf32>
    %156 = vector.extract_strided_slice %141 {offsets = [0, 6], sizes = [4, 2], strides = [1, 1]} : vector<4x8xf32> to vector<4x2xf32>
    %157 = arith.negf %156 : vector<4x2xf32>
    %158 = math.exp %157 : vector<4x2xf32>
    %cst_30 = arith.constant 1.000000e+00 : f32
    %159 = vector.broadcast %cst_30 : f32 to vector<4x2xf32>
    %160 = arith.addf %159, %158 : vector<4x2xf32>
    %161 = arith.divf %159, %160 : vector<4x2xf32>
    %162 = arith.mulf %122, %147 : vector<4x2xf32>
    %163 = arith.mulf %153, %155 : vector<4x2xf32>
    %164 = arith.addf %162, %163 : vector<4x2xf32>
    %165 = math.tanh %164 : vector<4x2xf32>
    %166 = arith.mulf %161, %165 : vector<4x2xf32>
    %c3_31 = arith.constant 3 : index
    %c0_32 = arith.constant 0 : index
    %c0_33 = arith.constant 0 : index
    %167 = vector.load %arg3[%c3_31, %c0_32, %c0_33] : memref<8x4x2xf32, #tpu.memory_space<vmem>>, vector<1x4x2xf32>
    %168 = vector.shape_cast %167 : vector<1x4x2xf32> to vector<4x2xf32>
    %169 = vector.shape_cast %166 : vector<4x2xf32> to vector<1x4x2xf32>
    tpu.vector_store %arg3[%c3_31, %c0_32, %c0_33], %169 {strides = array<i32>} : memref<8x4x2xf32, #tpu.memory_space<vmem>>, vector<1x4x2xf32>,
    %c4 = arith.constant 4 : index
    %c0_34 = arith.constant 0 : index
    %c0_35 = arith.constant 0 : index
    %170 = vector.load %arg1[%c4, %c0_34, %c0_35] : memref<8x4x8xf32, #tpu.memory_space<vmem>>, vector<1x4x8xf32>
    %171 = vector.shape_cast %170 : vector<1x4x8xf32> to vector<4x8xf32>
    %172 = vector.extract_strided_slice %164 {offsets = [0, 0], sizes = [4, 1], strides = [1, 1]} : vector<4x2xf32> to vector<4x1xf32>
    %173 = vector.extract_strided_slice %0 {offsets = [0, 0], sizes = [1, 8], strides = [1, 1]} : vector<2x8xf32> to vector<1x8xf32>
    %174 = vector.broadcast %172 : vector<4x1xf32> to vector<4x8xf32>
    %175 = vector.broadcast %173 : vector<1x8xf32> to vector<4x8xf32>
    %176 = arith.mulf %174, %175 : vector<4x8xf32>
    %177 = arith.addf %171, %176 : vector<4x8xf32>
    %178 = vector.extract_strided_slice %164 {offsets = [0, 1], sizes = [4, 1], strides = [1, 1]} : vector<4x2xf32> to vector<4x1xf32>
    %179 = vector.extract_strided_slice %0 {offsets = [1, 0], sizes = [1, 8], strides = [1, 1]} : vector<2x8xf32> to vector<1x8xf32>
    %180 = vector.broadcast %178 : vector<4x1xf32> to vector<4x8xf32>
    %181 = vector.broadcast %179 : vector<1x8xf32> to vector<4x8xf32>
    %182 = arith.mulf %180, %181 : vector<4x8xf32>
    %183 = arith.addf %177, %182 : vector<4x8xf32>
    %184 = vector.extract_strided_slice %183 {offsets = [0, 0], sizes = [4, 2], strides = [1, 1]} : vector<4x8xf32> to vector<4x2xf32>
    %185 = arith.negf %184 : vector<4x2xf32>
    %186 = math.exp %185 : vector<4x2xf32>
    %cst_36 = arith.constant 1.000000e+00 : f32
    %187 = vector.broadcast %cst_36 : f32 to vector<4x2xf32>
    %188 = arith.addf %187, %186 : vector<4x2xf32>
    %189 = arith.divf %187, %188 : vector<4x2xf32>
    %190 = vector.extract_strided_slice %183 {offsets = [0, 2], sizes = [4, 2], strides = [1, 1]} : vector<4x8xf32> to vector<4x2xf32>
    %191 = arith.negf %190 : vector<4x2xf32>
    %192 = math.exp %191 : vector<4x2xf32>
    %cst_37 = arith.constant 1.000000e+00 : f32
    %193 = vector.broadcast %cst_37 : f32 to vector<4x2xf32>
    %194 = arith.addf %193, %192 : vector<4x2xf32>
    %195 = arith.divf %193, %194 : vector<4x2xf32>
    %196 = vector.extract_strided_slice %183 {offsets = [0, 4], sizes = [4, 2], strides = [1, 1]} : vector<4x8xf32> to vector<4x2xf32>
    %197 = math.tanh %196 : vector<4x2xf32>
    %198 = vector.extract_strided_slice %183 {offsets = [0, 6], sizes = [4, 2], strides = [1, 1]} : vector<4x8xf32> to vector<4x2xf32>
    %199 = arith.negf %198 : vector<4x2xf32>
    %200 = math.exp %199 : vector<4x2xf32>
    %cst_38 = arith.constant 1.000000e+00 : f32
    %201 = vector.broadcast %cst_38 : f32 to vector<4x2xf32>
    %202 = arith.addf %201, %200 : vector<4x2xf32>
    %203 = arith.divf %201, %202 : vector<4x2xf32>
    %204 = arith.mulf %164, %189 : vector<4x2xf32>
    %205 = arith.mulf %195, %197 : vector<4x2xf32>
    %206 = arith.addf %204, %205 : vector<4x2xf32>
    %207 = math.tanh %206 : vector<4x2xf32>
    %208 = arith.mulf %203, %207 : vector<4x2xf32>
    %c4_39 = arith.constant 4 : index
    %c0_40 = arith.constant 0 : index
    %c0_41 = arith.constant 0 : index
    %209 = vector.load %arg3[%c4_39, %c0_40, %c0_41] : memref<8x4x2xf32, #tpu.memory_space<vmem>>, vector<1x4x2xf32>
    %210 = vector.shape_cast %209 : vector<1x4x2xf32> to vector<4x2xf32>
    %211 = vector.shape_cast %208 : vector<4x2xf32> to vector<1x4x2xf32>
    tpu.vector_store %arg3[%c4_39, %c0_40, %c0_41], %211 {strides = array<i32>} : memref<8x4x2xf32, #tpu.memory_space<vmem>>, vector<1x4x2xf32>,
    %c5 = arith.constant 5 : index
    %c0_42 = arith.constant 0 : index
    %c0_43 = arith.constant 0 : index
    %212 = vector.load %arg1[%c5, %c0_42, %c0_43] : memref<8x4x8xf32, #tpu.memory_space<vmem>>, vector<1x4x8xf32>
    %213 = vector.shape_cast %212 : vector<1x4x8xf32> to vector<4x8xf32>
    %214 = vector.extract_strided_slice %206 {offsets = [0, 0], sizes = [4, 1], strides = [1, 1]} : vector<4x2xf32> to vector<4x1xf32>
    %215 = vector.extract_strided_slice %0 {offsets = [0, 0], sizes = [1, 8], strides = [1, 1]} : vector<2x8xf32> to vector<1x8xf32>
    %216 = vector.broadcast %214 : vector<4x1xf32> to vector<4x8xf32>
    %217 = vector.broadcast %215 : vector<1x8xf32> to vector<4x8xf32>
    %218 = arith.mulf %216, %217 : vector<4x8xf32>
    %219 = arith.addf %213, %218 : vector<4x8xf32>
    %220 = vector.extract_strided_slice %206 {offsets = [0, 1], sizes = [4, 1], strides = [1, 1]} : vector<4x2xf32> to vector<4x1xf32>
    %221 = vector.extract_strided_slice %0 {offsets = [1, 0], sizes = [1, 8], strides = [1, 1]} : vector<2x8xf32> to vector<1x8xf32>
    %222 = vector.broadcast %220 : vector<4x1xf32> to vector<4x8xf32>
    %223 = vector.broadcast %221 : vector<1x8xf32> to vector<4x8xf32>
    %224 = arith.mulf %222, %223 : vector<4x8xf32>
    %225 = arith.addf %219, %224 : vector<4x8xf32>
    %226 = vector.extract_strided_slice %225 {offsets = [0, 0], sizes = [4, 2], strides = [1, 1]} : vector<4x8xf32> to vector<4x2xf32>
    %227 = arith.negf %226 : vector<4x2xf32>
    %228 = math.exp %227 : vector<4x2xf32>
    %cst_44 = arith.constant 1.000000e+00 : f32
    %229 = vector.broadcast %cst_44 : f32 to vector<4x2xf32>
    %230 = arith.addf %229, %228 : vector<4x2xf32>
    %231 = arith.divf %229, %230 : vector<4x2xf32>
    %232 = vector.extract_strided_slice %225 {offsets = [0, 2], sizes = [4, 2], strides = [1, 1]} : vector<4x8xf32> to vector<4x2xf32>
    %233 = arith.negf %232 : vector<4x2xf32>
    %234 = math.exp %233 : vector<4x2xf32>
    %cst_45 = arith.constant 1.000000e+00 : f32
    %235 = vector.broadcast %cst_45 : f32 to vector<4x2xf32>
    %236 = arith.addf %235, %234 : vector<4x2xf32>
    %237 = arith.divf %235, %236 : vector<4x2xf32>
    %238 = vector.extract_strided_slice %225 {offsets = [0, 4], sizes = [4, 2], strides = [1, 1]} : vector<4x8xf32> to vector<4x2xf32>
    %239 = math.tanh %238 : vector<4x2xf32>
    %240 = vector.extract_strided_slice %225 {offsets = [0, 6], sizes = [4, 2], strides = [1, 1]} : vector<4x8xf32> to vector<4x2xf32>
    %241 = arith.negf %240 : vector<4x2xf32>
    %242 = math.exp %241 : vector<4x2xf32>
    %cst_46 = arith.constant 1.000000e+00 : f32
    %243 = vector.broadcast %cst_46 : f32 to vector<4x2xf32>
    %244 = arith.addf %243, %242 : vector<4x2xf32>
    %245 = arith.divf %243, %244 : vector<4x2xf32>
    %246 = arith.mulf %206, %231 : vector<4x2xf32>
    %247 = arith.mulf %237, %239 : vector<4x2xf32>
    %248 = arith.addf %246, %247 : vector<4x2xf32>
    %249 = math.tanh %248 : vector<4x2xf32>
    %250 = arith.mulf %245, %249 : vector<4x2xf32>
    %c5_47 = arith.constant 5 : index
    %c0_48 = arith.constant 0 : index
    %c0_49 = arith.constant 0 : index
    %251 = vector.load %arg3[%c5_47, %c0_48, %c0_49] : memref<8x4x2xf32, #tpu.memory_space<vmem>>, vector<1x4x2xf32>
    %252 = vector.shape_cast %251 : vector<1x4x2xf32> to vector<4x2xf32>
    %253 = vector.shape_cast %250 : vector<4x2xf32> to vector<1x4x2xf32>
    tpu.vector_store %arg3[%c5_47, %c0_48, %c0_49], %253 {strides = array<i32>} : memref<8x4x2xf32, #tpu.memory_space<vmem>>, vector<1x4x2xf32>,
    %c6 = arith.constant 6 : index
    %c0_50 = arith.constant 0 : index
    %c0_51 = arith.constant 0 : index
    %254 = vector.load %arg1[%c6, %c0_50, %c0_51] : memref<8x4x8xf32, #tpu.memory_space<vmem>>, vector<1x4x8xf32>
    %255 = vector.shape_cast %254 : vector<1x4x8xf32> to vector<4x8xf32>
    %256 = vector.extract_strided_slice %248 {offsets = [0, 0], sizes = [4, 1], strides = [1, 1]} : vector<4x2xf32> to vector<4x1xf32>
    %257 = vector.extract_strided_slice %0 {offsets = [0, 0], sizes = [1, 8], strides = [1, 1]} : vector<2x8xf32> to vector<1x8xf32>
    %258 = vector.broadcast %256 : vector<4x1xf32> to vector<4x8xf32>
    %259 = vector.broadcast %257 : vector<1x8xf32> to vector<4x8xf32>
    %260 = arith.mulf %258, %259 : vector<4x8xf32>
    %261 = arith.addf %255, %260 : vector<4x8xf32>
    %262 = vector.extract_strided_slice %248 {offsets = [0, 1], sizes = [4, 1], strides = [1, 1]} : vector<4x2xf32> to vector<4x1xf32>
    %263 = vector.extract_strided_slice %0 {offsets = [1, 0], sizes = [1, 8], strides = [1, 1]} : vector<2x8xf32> to vector<1x8xf32>
    %264 = vector.broadcast %262 : vector<4x1xf32> to vector<4x8xf32>
    %265 = vector.broadcast %263 : vector<1x8xf32> to vector<4x8xf32>
    %266 = arith.mulf %264, %265 : vector<4x8xf32>
    %267 = arith.addf %261, %266 : vector<4x8xf32>
    %268 = vector.extract_strided_slice %267 {offsets = [0, 0], sizes = [4, 2], strides = [1, 1]} : vector<4x8xf32> to vector<4x2xf32>
    %269 = arith.negf %268 : vector<4x2xf32>
    %270 = math.exp %269 : vector<4x2xf32>
    %cst_52 = arith.constant 1.000000e+00 : f32
    %271 = vector.broadcast %cst_52 : f32 to vector<4x2xf32>
    %272 = arith.addf %271, %270 : vector<4x2xf32>
    %273 = arith.divf %271, %272 : vector<4x2xf32>
    %274 = vector.extract_strided_slice %267 {offsets = [0, 2], sizes = [4, 2], strides = [1, 1]} : vector<4x8xf32> to vector<4x2xf32>
    %275 = arith.negf %274 : vector<4x2xf32>
    %276 = math.exp %275 : vector<4x2xf32>
    %cst_53 = arith.constant 1.000000e+00 : f32
    %277 = vector.broadcast %cst_53 : f32 to vector<4x2xf32>
    %278 = arith.addf %277, %276 : vector<4x2xf32>
    %279 = arith.divf %277, %278 : vector<4x2xf32>
    %280 = vector.extract_strided_slice %267 {offsets = [0, 4], sizes = [4, 2], strides = [1, 1]} : vector<4x8xf32> to vector<4x2xf32>
    %281 = math.tanh %280 : vector<4x2xf32>
    %282 = vector.extract_strided_slice %267 {offsets = [0, 6], sizes = [4, 2], strides = [1, 1]} : vector<4x8xf32> to vector<4x2xf32>
    %283 = arith.negf %282 : vector<4x2xf32>
    %284 = math.exp %283 : vector<4x2xf32>
    %cst_54 = arith.constant 1.000000e+00 : f32
    %285 = vector.broadcast %cst_54 : f32 to vector<4x2xf32>
    %286 = arith.addf %285, %284 : vector<4x2xf32>
    %287 = arith.divf %285, %286 : vector<4x2xf32>
    %288 = arith.mulf %248, %273 : vector<4x2xf32>
    %289 = arith.mulf %279, %281 : vector<4x2xf32>
    %290 = arith.addf %288, %289 : vector<4x2xf32>
    %291 = math.tanh %290 : vector<4x2xf32>
    %292 = arith.mulf %287, %291 : vector<4x2xf32>
    %c6_55 = arith.constant 6 : index
    %c0_56 = arith.constant 0 : index
    %c0_57 = arith.constant 0 : index
    %293 = vector.load %arg3[%c6_55, %c0_56, %c0_57] : memref<8x4x2xf32, #tpu.memory_space<vmem>>, vector<1x4x2xf32>
    %294 = vector.shape_cast %293 : vector<1x4x2xf32> to vector<4x2xf32>
    %295 = vector.shape_cast %292 : vector<4x2xf32> to vector<1x4x2xf32>
    tpu.vector_store %arg3[%c6_55, %c0_56, %c0_57], %295 {strides = array<i32>} : memref<8x4x2xf32, #tpu.memory_space<vmem>>, vector<1x4x2xf32>,
    %c7 = arith.constant 7 : index
    %c0_58 = arith.constant 0 : index
    %c0_59 = arith.constant 0 : index
    %296 = vector.load %arg1[%c7, %c0_58, %c0_59] : memref<8x4x8xf32, #tpu.memory_space<vmem>>, vector<1x4x8xf32>
    %297 = vector.shape_cast %296 : vector<1x4x8xf32> to vector<4x8xf32>
    %298 = vector.extract_strided_slice %290 {offsets = [0, 0], sizes = [4, 1], strides = [1, 1]} : vector<4x2xf32> to vector<4x1xf32>
    %299 = vector.extract_strided_slice %0 {offsets = [0, 0], sizes = [1, 8], strides = [1, 1]} : vector<2x8xf32> to vector<1x8xf32>
    %300 = vector.broadcast %298 : vector<4x1xf32> to vector<4x8xf32>
    %301 = vector.broadcast %299 : vector<1x8xf32> to vector<4x8xf32>
    %302 = arith.mulf %300, %301 : vector<4x8xf32>
    %303 = arith.addf %297, %302 : vector<4x8xf32>
    %304 = vector.extract_strided_slice %290 {offsets = [0, 1], sizes = [4, 1], strides = [1, 1]} : vector<4x2xf32> to vector<4x1xf32>
    %305 = vector.extract_strided_slice %0 {offsets = [1, 0], sizes = [1, 8], strides = [1, 1]} : vector<2x8xf32> to vector<1x8xf32>
    %306 = vector.broadcast %304 : vector<4x1xf32> to vector<4x8xf32>
    %307 = vector.broadcast %305 : vector<1x8xf32> to vector<4x8xf32>
    %308 = arith.mulf %306, %307 : vector<4x8xf32>
    %309 = arith.addf %303, %308 : vector<4x8xf32>
    %310 = vector.extract_strided_slice %309 {offsets = [0, 0], sizes = [4, 2], strides = [1, 1]} : vector<4x8xf32> to vector<4x2xf32>
    %311 = arith.negf %310 : vector<4x2xf32>
    %312 = math.exp %311 : vector<4x2xf32>
    %cst_60 = arith.constant 1.000000e+00 : f32
    %313 = vector.broadcast %cst_60 : f32 to vector<4x2xf32>
    %314 = arith.addf %313, %312 : vector<4x2xf32>
    %315 = arith.divf %313, %314 : vector<4x2xf32>
    %316 = vector.extract_strided_slice %309 {offsets = [0, 2], sizes = [4, 2], strides = [1, 1]} : vector<4x8xf32> to vector<4x2xf32>
    %317 = arith.negf %316 : vector<4x2xf32>
    %318 = math.exp %317 : vector<4x2xf32>
    %cst_61 = arith.constant 1.000000e+00 : f32
    %319 = vector.broadcast %cst_61 : f32 to vector<4x2xf32>
    %320 = arith.addf %319, %318 : vector<4x2xf32>
    %321 = arith.divf %319, %320 : vector<4x2xf32>
    %322 = vector.extract_strided_slice %309 {offsets = [0, 4], sizes = [4, 2], strides = [1, 1]} : vector<4x8xf32> to vector<4x2xf32>
    %323 = math.tanh %322 : vector<4x2xf32>
    %324 = vector.extract_strided_slice %309 {offsets = [0, 6], sizes = [4, 2], strides = [1, 1]} : vector<4x8xf32> to vector<4x2xf32>
    %325 = arith.negf %324 : vector<4x2xf32>
    %326 = math.exp %325 : vector<4x2xf32>
    %cst_62 = arith.constant 1.000000e+00 : f32
    %327 = vector.broadcast %cst_62 : f32 to vector<4x2xf32>
    %328 = arith.addf %327, %326 : vector<4x2xf32>
    %329 = arith.divf %327, %328 : vector<4x2xf32>
    %330 = arith.mulf %290, %315 : vector<4x2xf32>
    %331 = arith.mulf %321, %323 : vector<4x2xf32>
    %332 = arith.addf %330, %331 : vector<4x2xf32>
    %333 = math.tanh %332 : vector<4x2xf32>
    %334 = arith.mulf %329, %333 : vector<4x2xf32>
    %c7_63 = arith.constant 7 : index
    %c0_64 = arith.constant 0 : index
    %c0_65 = arith.constant 0 : index
    %335 = vector.load %arg3[%c7_63, %c0_64, %c0_65] : memref<8x4x2xf32, #tpu.memory_space<vmem>>, vector<1x4x2xf32>
    %336 = vector.shape_cast %335 : vector<1x4x2xf32> to vector<4x2xf32>
    %337 = vector.shape_cast %334 : vector<4x2xf32> to vector<1x4x2xf32>
    tpu.vector_store %arg3[%c7_63, %c0_64, %c0_65], %337 {strides = array<i32>} : memref<8x4x2xf32, #tpu.memory_space<vmem>>, vector<1x4x2xf32>,
    %c0_66 = arith.constant 0 : index
    %c0_67 = arith.constant 0 : index
    %c0_68 = arith.constant 0 : index
    %338 = vector.load %arg4[%c0_66, %c0_67, %c0_68] : memref<1x4x2xf32, #tpu.memory_space<vmem>>, vector<1x4x2xf32>
    %339 = vector.shape_cast %338 : vector<1x4x2xf32> to vector<4x2xf32>
    %340 = vector.shape_cast %332 : vector<4x2xf32> to vector<1x4x2xf32>
    tpu.vector_store %arg4[%c0_66, %c0_67, %c0_68], %340 {strides = array<i32>} : memref<1x4x2xf32, #tpu.memory_space<vmem>>, vector<1x4x2xf32>,
    return
  }
  func.func @transform_0(%arg0: i32) -> (i32, i32, i32) {
    %c0_i32 = arith.constant 0 : i32
    %c0_i32_0 = arith.constant 0 : i32
    %c0_i32_1 = arith.constant 0 : i32
    %c0_i32_2 = arith.constant 0 : i32
    return %c0_i32, %c0_i32_0, %c0_i32_1 : i32, i32, i32
  }
  func.func @transform_1(%arg0: i32) -> (i32, i32) {
    %c0_i32 = arith.constant 0 : i32
    %c0_i32_0 = arith.constant 0 : i32
    %c0_i32_1 = arith.constant 0 : i32
    return %c0_i32, %c0_i32_0 : i32, i32
  }
  func.func @transform_2(%arg0: i32) -> (i32, i32, i32) {
    %c0_i32 = arith.constant 0 : i32
    %c0_i32_0 = arith.constant 0 : i32
    %c0_i32_1 = arith.constant 0 : i32
    %c0_i32_2 = arith.constant 0 : i32
    return %c0_i32, %c0_i32_0, %c0_i32_1 : i32, i32, i32
  }
  func.func @transform_3(%arg0: i32) -> (i32, i32, i32) {
    %c0_i32 = arith.constant 0 : i32
    %c0_i32_0 = arith.constant 0 : i32
    %c0_i32_1 = arith.constant 0 : i32
    %c0_i32_2 = arith.constant 0 : i32
    return %c0_i32, %c0_i32_0, %c0_i32_1 : i32, i32, i32
  }
}

</mosaic_0001>

<llo_original>
// kernel: my_lstm_forward.1
$region0: #{my_lstm_forward.1}
  #allocation0 [shape = 'u32[]', space=smem, size = 0x4, offset = 0x4, fixed_abs, tag = 'smem constant byte address 0x4 - core index']
  #allocation1 [shape = 'u32[72,128]{1,0:T(1,128)}', space=vmem, size = 0x9000, scoped, tag = 'internal scratch']
  %s0 = inlined_call_operand.vmem [shape: f32[8,4,8], index: 0, kind: input, shape index: {}]
  %s1 = inlined_call_operand.vmem [shape: f32[2,8], index: 1, kind: input, shape index: {}]
  %s2 = inlined_call_operand.vmem [shape: f32[8,4,2], index: 2, kind: output, shape index: {0}]
  %s3 = inlined_call_operand.vmem [shape: f32[1,4,2], index: 3, kind: output, shape index: {1}]
  %4 = xla_tuple %s2, %s3
  %s5 = sld [smem:[#allocation0]]
  $region26: #{my_lstm_forward.1} parent=0
    _
  %s7 = ssub.s32 1, %s5
  %s8 = scalar_select 0, %s7, %s5
  // Predicated region
  $region2: #{my_lstm_forward.1} parent=0 // pred_check
    _
  $region3: #{my_lstm_forward.1} parent=0 // pred_check_branch
    %10 = sbr.rel (0) target = $region5
  $region4: #{my_lstm_forward.1} parent=0 // pred_region
    _
  $region5: #{my_lstm_forward.1} parent=0 // pred_fallthru
    _
  // Predicated region
  $region6: #{my_lstm_forward.1} parent=0 // pred_check
    _
  $region7: #{my_lstm_forward.1} parent=0 // pred_check_branch
    %12 = sbr.rel (0) target = $region9
  $region8: #{my_lstm_forward.1} parent=0 // pred_region
    _
  $region9: #{my_lstm_forward.1} parent=0 // pred_fallthru
    _
  %v13 = vld [vmem:[%s1] sm:$0x3]
  %v14 = vld [vmem:[%s0] sm:$0xf]
  %v15 = vperm.slane %v13, 0
  %v16 = vmul.f32 %v15, 0.0
  %v17 = vadd.f32 %v14, %v16
  %v18 = vperm.slane %v13, 1
  %v19 = vmul.f32 %v18, 0.0
  %v20 = vadd.f32 %v17, %v19
  %v21 = vxor.u32 %v20, 2147483648
  %v22 = vmul.f32 %v21, 1.442695
  %v23 = vpow.pop %v22
  %v24 = vadd.f32 %v23, 1.0
  %v25 = vrcp.pop %v24
  %v26 = vmul.f32 %v24, %v25
  %v27 = vsub.f32 1.0, %v26
  %v28 = vmul.f32 %v25, %v27
  %v29 = vadd.f32 %v25, %v28
  %vm30 = vweird.f32 %v24
  %vm31 = vweird.f32 %v25
  %vm32 = vmor %vm30, %vm31
  %v33 = vsel %vm32, %v25, %v29
  %v34 = vand.u32 2147483647, %v24
  %vm35 = vcmp.eq.f32.partialorder %v34, 8.507059e+37
  %v36 = vand.u32 %v24, 2147483648
  %v37 = vor.u32 1.1754944e-38, %v36
  %v38 = vsel %vm35, %v37, %v33
  %v39 = vmul.f32 1.0, %v38
  %v40 = vtanh.pop %v20
  %v41 = vmul.f32 %v39, 0.0
  %43 = vrot.lane.b32.xlu0 %v40, 126
  %v44 = vpop.permute.xlu0 %43
  %v46 = vmul.f32 %v39, %v44
  %48 = vrot.lane.b32.xlu0 %v46, 126
  %v49 = vpop.permute.xlu0 %48
  %v51 = vadd.f32 %v41, %v49
  %v52 = vtanh.pop %v51
  %54 = vrot.lane.b32.xlu0 %v52, 6
  %v55 = vpop.permute.xlu0 %54
  %v57 = vmul.f32 %v39, %v55
  %59 = vrot.lane.b32.xlu0 %v57, 122
  %v60 = vpop.permute.xlu0 %59
  %vm62 = vcmask 11264
  %63 = vst.msk [vmem:[%s2] sm:$0xf] %vm62, %v60
  %s64 = scalar_lea.vmem %s0, 4
  %v65 = vld [vmem:[%s64] sm:$0xf]
  %67 = vset.pattern.permute.xlu0 0
  %68 = vperm.xlu0 %67, %v51
  %v69 = vpop.permute.xlu0 %68
  %v71 = vmul.f32 %v69, %v15
  %v72 = vadd.f32 %v65, %v71
  %73 = vset.pattern.permute.xlu0 1
  %74 = vperm.xlu0 %73, %v51
  %v75 = vpop.permute.xlu0 %74
  %v77 = vmul.f32 %v75, %v18
  %v78 = vadd.f32 %v72, %v77
  %v79 = vxor.u32 %v78, 2147483648
  %v80 = vmul.f32 %v79, 1.442695
  %v81 = vpow.pop %v80
  %v82 = vadd.f32 %v81, 1.0
  %v83 = vrcp.pop %v82
  %v84 = vmul.f32 %v82, %v83
  %v85 = vsub.f32 1.0, %v84
  %v86 = vmul.f32 %v83, %v85
  %v87 = vadd.f32 %v83, %v86
  %vm88 = vweird.f32 %v82
  %vm89 = vweird.f32 %v83
  %vm90 = vmor %vm88, %vm89
  %v91 = vsel %vm90, %v83, %v87
  %v92 = vand.u32 2147483647, %v82
  %vm93 = vcmp.eq.f32.partialorder %v92, 8.507059e+37
  %v94 = vand.u32 %v82, 2147483648
  %v95 = vor.u32 1.1754944e-38, %v94
  %v96 = vsel %vm93, %v95, %v91
  %v97 = vmul.f32 1.0, %v96
  %v98 = vtanh.pop %v78
  %v99 = vmul.f32 %v51, %v97
  %101 = vrot.lane.b32.xlu0 %v98, 126
  %v102 = vpop.permute.xlu0 %101
  %v104 = vmul.f32 %v97, %v102
  %106 = vrot.lane.b32.xlu0 %v104, 126
  %v107 = vpop.permute.xlu0 %106
  %v109 = vadd.f32 %v99, %v107
  %v110 = vtanh.pop %v109
  %112 = vrot.lane.b32.xlu0 %v110, 6
  %v113 = vpop.permute.xlu0 %112
  %v115 = vmul.f32 %v97, %v113
  %117 = vrot.lane.b32.xlu0 %v115, 122
  %v118 = vpop.permute.xlu0 %117
  %s120 = scalar_lea.vmem %s2, 4
  %121 = vst.msk [vmem:[%s120] sm:$0xf] %vm62, %v118
  %s122 = scalar_lea.vmem %s0, 8
  %v123 = vld [vmem:[%s122] sm:$0xf]
  %125 = vset.pattern.permute.xlu0 0
  %126 = vperm.xlu0 %125, %v109
  %v127 = vpop.permute.xlu0 %126
  %v129 = vmul.f32 %v127, %v15
  %v130 = vadd.f32 %v123, %v129
  %131 = vset.pattern.permute.xlu0 1
  %132 = vperm.xlu0 %131, %v109
  %v133 = vpop.permute.xlu0 %132
  %v135 = vmul.f32 %v133, %v18
  %v136 = vadd.f32 %v130, %v135
  %v137 = vxor.u32 %v136, 2147483648
  %v138 = vmul.f32 %v137, 1.442695
  %v139 = vpow.pop %v138
  %v140 = vadd.f32 %v139, 1.0
  %v141 = vrcp.pop %v140
  %v142 = vmul.f32 %v140, %v141
  %v143 = vsub.f32 1.0, %v142
  %v144 = vmul.f32 %v141, %v143
  %v145 = vadd.f32 %v141, %v144
  %vm146 = vweird.f32 %v140
  %vm147 = vweird.f32 %v141
  %vm148 = vmor %vm146, %vm147
  %v149 = vsel %vm148, %v141, %v145
  %v150 = vand.u32 2147483647, %v140
  %vm151 = vcmp.eq.f32.partialorder %v150, 8.507059e+37
  %v152 = vand.u32 %v140, 2147483648
  %v153 = vor.u32 1.1754944e-38, %v152
  %v154 = vsel %vm151, %v153, %v149
  %v155 = vmul.f32 1.0, %v154
  %v156 = vtanh.pop %v136
  %v157 = vmul.f32 %v109, %v155
  %159 = vrot.lane.b32.xlu0 %v156, 126
  %v160 = vpop.permute.xlu0 %159
  %v162 = vmul.f32 %v155, %v160
  %164 = vrot.lane.b32.xlu0 %v162, 126
  %v165 = vpop.permute.xlu0 %164
  %v167 = vadd.f32 %v157, %v165
  %v168 = vtanh.pop %v167
  %170 = vrot.lane.b32.xlu0 %v168, 6
  %v171 = vpop.permute.xlu0 %170
  %v173 = vmul.f32 %v155, %v171
  %175 = vrot.lane.b32.xlu0 %v173, 122
  %v176 = vpop.permute.xlu0 %175
  %s178 = scalar_lea.vmem %s2, 8
  %179 = vst.msk [vmem:[%s178] sm:$0xf] %vm62, %v176
  %s180 = scalar_lea.vmem %s0, 12
  %v181 = vld [vmem:[%s180] sm:$0xf]
  %183 = vset.pattern.permute.xlu0 0
  %184 = vperm.xlu0 %183, %v167
  %v185 = vpop.permute.xlu0 %184
  %v187 = vmul.f32 %v185, %v15
  %v188 = vadd.f32 %v181, %v187
  %189 = vset.pattern.permute.xlu0 1
  %190 = vperm.xlu0 %189, %v167
  %v191 = vpop.permute.xlu0 %190
  %v193 = vmul.f32 %v191, %v18
  %v194 = vadd.f32 %v188, %v193
  %v195 = vxor.u32 %v194, 2147483648
  %v196 = vmul.f32 %v195, 1.442695
  %v197 = vpow.pop %v196
  %v198 = vadd.f32 %v197, 1.0
  %v199 = vrcp.pop %v198
  %v200 = vmul.f32 %v198, %v199
  %v201 = vsub.f32 1.0, %v200
  %v202 = vmul.f32 %v199, %v201
  %v203 = vadd.f32 %v199, %v202
  %vm204 = vweird.f32 %v198
  %vm205 = vweird.f32 %v199
  %vm206 = vmor %vm204, %vm205
  %v207 = vsel %vm206, %v199, %v203
  %v208 = vand.u32 2147483647, %v198
  %vm209 = vcmp.eq.f32.partialorder %v208, 8.507059e+37
  %v210 = vand.u32 %v198, 2147483648
  %v211 = vor.u32 1.1754944e-38, %v210
  %v212 = vsel %vm209, %v211, %v207
  %v213 = vmul.f32 1.0, %v212
  %v214 = vtanh.pop %v194
  %v215 = vmul.f32 %v167, %v213
  %217 = vrot.lane.b32.xlu0 %v214, 126
  %v218 = vpop.permute.xlu0 %217
  %v220 = vmul.f32 %v213, %v218
  %222 = vrot.lane.b32.xlu0 %v220, 126
  %v223 = vpop.permute.xlu0 %222
  %v225 = vadd.f32 %v215, %v223
  %v226 = vtanh.pop %v225
  %228 = vrot.lane.b32.xlu0 %v226, 6
  %v229 = vpop.permute.xlu0 %228
  %v231 = vmul.f32 %v213, %v229
  %233 = vrot.lane.b32.xlu0 %v231, 122
  %v234 = vpop.permute.xlu0 %233
  %s236 = scalar_lea.vmem %s2, 12
  %237 = vst.msk [vmem:[%s236] sm:$0xf] %vm62, %v234
  %s238 = scalar_lea.vmem %s0, 16
  %v239 = vld [vmem:[%s238] sm:$0xf]
  %241 = vset.pattern.permute.xlu0 0
  %242 = vperm.xlu0 %241, %v225
  %v243 = vpop.permute.xlu0 %242
  %v245 = vmul.f32 %v243, %v15
  %v246 = vadd.f32 %v239, %v245
  %247 = vset.pattern.permute.xlu0 1
  %248 = vperm.xlu0 %247, %v225
  %v249 = vpop.permute.xlu0 %248
  %v251 = vmul.f32 %v249, %v18
  %v252 = vadd.f32 %v246, %v251
  %v253 = vxor.u32 %v252, 2147483648
  %v254 = vmul.f32 %v253, 1.442695
  %v255 = vpow.pop %v254
  %v256 = vadd.f32 %v255, 1.0
  %v257 = vrcp.pop %v256
  %v258 = vmul.f32 %v256, %v257
  %v259 = vsub.f32 1.0, %v258
  %v260 = vmul.f32 %v257, %v259
  %v261 = vadd.f32 %v257, %v260
  %vm262 = vweird.f32 %v256
  %vm263 = vweird.f32 %v257
  %vm264 = vmor %vm262, %vm263
  %v265 = vsel %vm264, %v257, %v261
  %v266 = vand.u32 2147483647, %v256
  %vm267 = vcmp.eq.f32.partialorder %v266, 8.507059e+37
  %v268 = vand.u32 %v256, 2147483648
  %v269 = vor.u32 1.1754944e-38, %v268
  %v270 = vsel %vm267, %v269, %v265
  %v271 = vmul.f32 1.0, %v270
  %v272 = vtanh.pop %v252
  %v273 = vmul.f32 %v225, %v271
  %275 = vrot.lane.b32.xlu0 %v272, 126
  %v276 = vpop.permute.xlu0 %275
  %v278 = vmul.f32 %v271, %v276
  %280 = vrot.lane.b32.xlu0 %v278, 126
  %v281 = vpop.permute.xlu0 %280
  %v283 = vadd.f32 %v273, %v281
  %v284 = vtanh.pop %v283
  %286 = vrot.lane.b32.xlu0 %v284, 6
  %v287 = vpop.permute.xlu0 %286
  %v289 = vmul.f32 %v271, %v287
  %291 = vrot.lane.b32.xlu0 %v289, 122
  %v292 = vpop.permute.xlu0 %291
  %s294 = scalar_lea.vmem %s2, 16
  %295 = vst.msk [vmem:[%s294] sm:$0xf] %vm62, %v292
  %s296 = scalar_lea.vmem %s0, 20
  %v297 = vld [vmem:[%s296] sm:$0xf]
  %299 = vset.pattern.permute.xlu0 0
  %300 = vperm.xlu0 %299, %v283
  %v301 = vpop.permute.xlu0 %300
  %v303 = vmul.f32 %v301, %v15
  %v304 = vadd.f32 %v297, %v303
  %305 = vset.pattern.permute.xlu0 1
  %306 = vperm.xlu0 %305, %v283
  %v307 = vpop.permute.xlu0 %306
  %v309 = vmul.f32 %v307, %v18
  %v310 = vadd.f32 %v304, %v309
  %v311 = vxor.u32 %v310, 2147483648
  %v312 = vmul.f32 %v311, 1.442695
  %v313 = vpow.pop %v312
  %v314 = vadd.f32 %v313, 1.0
  %v315 = vrcp.pop %v314
  %v316 = vmul.f32 %v314, %v315
  %v317 = vsub.f32 1.0, %v316
  %v318 = vmul.f32 %v315, %v317
  %v319 = vadd.f32 %v315, %v318
  %vm320 = vweird.f32 %v314
  %vm321 = vweird.f32 %v315
  %vm322 = vmor %vm320, %vm321
  %v323 = vsel %vm322, %v315, %v319
  %v324 = vand.u32 2147483647, %v314
  %vm325 = vcmp.eq.f32.partialorder %v324, 8.507059e+37
  %v326 = vand.u32 %v314, 2147483648
  %v327 = vor.u32 1.1754944e-38, %v326
  %v328 = vsel %vm325, %v327, %v323
  %v329 = vmul.f32 1.0, %v328
  %v330 = vtanh.pop %v310
  %v331 = vmul.f32 %v283, %v329
  %333 = vrot.lane.b32.xlu0 %v330, 126
  %v334 = vpop.permute.xlu0 %333
  %v336 = vmul.f32 %v329, %v334
  %338 = vrot.lane.b32.xlu0 %v336, 126
  %v339 = vpop.permute.xlu0 %338
  %v341 = vadd.f32 %v331, %v339
  %v342 = vtanh.pop %v341
  %344 = vrot.lane.b32.xlu0 %v342, 6
  %v345 = vpop.permute.xlu0 %344
  %v347 = vmul.f32 %v329, %v345
  %349 = vrot.lane.b32.xlu0 %v347, 122
  %v350 = vpop.permute.xlu0 %349
  %s352 = scalar_lea.vmem %s2, 20
  %353 = vst.msk [vmem:[%s352] sm:$0xf] %vm62, %v350
  %s354 = scalar_lea.vmem %s0, 24
  %v355 = vld [vmem:[%s354] sm:$0xf]
  %357 = vset.pattern.permute.xlu0 0
  %358 = vperm.xlu0 %357, %v341
  %v359 = vpop.permute.xlu0 %358
  %v361 = vmul.f32 %v359, %v15
  %v362 = vadd.f32 %v355, %v361
  %363 = vset.pattern.permute.xlu0 1
  %364 = vperm.xlu0 %363, %v341
  %v365 = vpop.permute.xlu0 %364
  %v367 = vmul.f32 %v365, %v18
  %v368 = vadd.f32 %v362, %v367
  %v369 = vxor.u32 %v368, 2147483648
  %v370 = vmul.f32 %v369, 1.442695
  %v371 = vpow.pop %v370
  %v372 = vadd.f32 %v371, 1.0
  %v373 = vrcp.pop %v372
  %v374 = vmul.f32 %v372, %v373
  %v375 = vsub.f32 1.0, %v374
  %v376 = vmul.f32 %v373, %v375
  %v377 = vadd.f32 %v373, %v376
  %vm378 = vweird.f32 %v372
  %vm379 = vweird.f32 %v373
  %vm380 = vmor %vm378, %vm379
  %v381 = vsel %vm380, %v373, %v377
  %v382 = vand.u32 2147483647, %v372
  %vm383 = vcmp.eq.f32.partialorder %v382, 8.507059e+37
  %v384 = vand.u32 %v372, 2147483648
  %v385 = vor.u32 1.1754944e-38, %v384
  %v386 = vsel %vm383, %v385, %v381
  %v387 = vmul.f32 1.0, %v386
  %v388 = vtanh.pop %v368
  %v389 = vmul.f32 %v341, %v387
  %391 = vrot.lane.b32.xlu0 %v388, 126
  %v392 = vpop.permute.xlu0 %391
  %v394 = vmul.f32 %v387, %v392
  %396 = vrot.lane.b32.xlu0 %v394, 126
  %v397 = vpop.permute.xlu0 %396
  %v399 = vadd.f32 %v389, %v397
  %v400 = vtanh.pop %v399
  %402 = vrot.lane.b32.xlu0 %v400, 6
  %v403 = vpop.permute.xlu0 %402
  %v405 = vmul.f32 %v387, %v403
  %407 = vrot.lane.b32.xlu0 %v405, 122
  %v408 = vpop.permute.xlu0 %407
  %s410 = scalar_lea.vmem %s2, 24
  %411 = vst.msk [vmem:[%s410] sm:$0xf] %vm62, %v408
  %s412 = scalar_lea.vmem %s0, 28
  %v413 = vld [vmem:[%s412] sm:$0xf]
  %415 = vset.pattern.permute.xlu0 0
  %416 = vperm.xlu0 %415, %v399
  %v417 = vpop.permute.xlu0 %416
  %v419 = vmul.f32 %v417, %v15
  %v420 = vadd.f32 %v413, %v419
  %421 = vset.pattern.permute.xlu0 1
  %422 = vperm.xlu0 %421, %v399
  %v423 = vpop.permute.xlu0 %422
  %v425 = vmul.f32 %v423, %v18
  %v426 = vadd.f32 %v420, %v425
  %v427 = vxor.u32 %v426, 2147483648
  %v428 = vmul.f32 %v427, 1.442695
  %v429 = vpow.pop %v428
  %v430 = vadd.f32 %v429, 1.0
  %v431 = vrcp.pop %v430
  %v432 = vmul.f32 %v430, %v431
  %v433 = vsub.f32 1.0, %v432
  %v434 = vmul.f32 %v431, %v433
  %v435 = vadd.f32 %v431, %v434
  %vm436 = vweird.f32 %v430
  %vm437 = vweird.f32 %v431
  %vm438 = vmor %vm436, %vm437
  %v439 = vsel %vm438, %v431, %v435
  %v440 = vand.u32 2147483647, %v430
  %vm441 = vcmp.eq.f32.partialorder %v440, 8.507059e+37
  %v442 = vand.u32 %v430, 2147483648
  %v443 = vor.u32 1.1754944e-38, %v442
  %v444 = vsel %vm441, %v443, %v439
  %v445 = vmul.f32 1.0, %v444
  %v446 = vtanh.pop %v426
  %v447 = vmul.f32 %v399, %v445
  %449 = vrot.lane.b32.xlu0 %v446, 126
  %v450 = vpop.permute.xlu0 %449
  %v452 = vmul.f32 %v445, %v450
  %454 = vrot.lane.b32.xlu0 %v452, 126
  %v455 = vpop.permute.xlu0 %454
  %v457 = vadd.f32 %v447, %v455
  %v458 = vtanh.pop %v457
  %460 = vrot.lane.b32.xlu0 %v458, 6
  %v461 = vpop.permute.xlu0 %460
  %v463 = vmul.f32 %v445, %v461
  %465 = vrot.lane.b32.xlu0 %v463, 122
  %v466 = vpop.permute.xlu0 %465
  %s468 = scalar_lea.vmem %s2, 28
  %469 = vst.msk [vmem:[%s468] sm:$0xf] %vm62, %v466
  %470 = vst.msk [vmem:[%s3] sm:$0xf] %vm62, %v457
  // Predicated region
  $region10: #{my_lstm_forward.1} parent=0 // pred_check
    _
  $region11: #{my_lstm_forward.1} parent=0 // pred_check_branch
    %472 = sbr.rel (0) target = $region13
  $region12: #{my_lstm_forward.1} parent=0 // pred_region
    _
  $region13: #{my_lstm_forward.1} parent=0 // pred_fallthru
    _
  // Predicated region
  $region14: #{my_lstm_forward.1} parent=0 // pred_check
    _
  $region15: #{my_lstm_forward.1} parent=0 // pred_check_branch
    %474 = sbr.rel (0) target = $region17
  $region16: #{my_lstm_forward.1} parent=0 // pred_region
    _
  $region17: #{my_lstm_forward.1} parent=0 // pred_fallthru
    _
  // Predicated region
  $region18: #{my_lstm_forward.1} parent=0 // pred_check
    _
  $region19: #{my_lstm_forward.1} parent=0 // pred_check_branch
    %476 = sbr.rel (0) target = $region21
  $region20: #{my_lstm_forward.1} parent=0 // pred_region
    _
  $region21: #{my_lstm_forward.1} parent=0 // pred_fallthru
    _
  // Predicated region
  $region22: #{my_lstm_forward.1} parent=0 // pred_check
    _
  $region23: #{my_lstm_forward.1} parent=0 // pred_check_branch
    %478 = sbr.rel (0) target = $region25
  $region24: #{my_lstm_forward.1} parent=0 // pred_region
    _
  $region25: #{my_lstm_forward.1} parent=0 // pred_fallthru
    _

</llo_original>
